<compile_context>
chip_gen: v7x
topology: tpu7x:2x2x1
jax: 0.10.0
libtpu: 0.0.40
codegen_flags: <defaults>
</compile_context>

<pallas_src>
import jax
import jax.numpy as jnp
from jax.experimental import pallas as pl
from jax.experimental.pallas import tpu as pltpu


def _round_up(n, m):
    return ((n + m - 1) // m) * m


def _choose_tiling(batch):
    """Pick (lane, row_tile, rows_padded) for a batch of `batch` elements."""
    # Lane axis: large multiple of 128 (full vreg lanes, unmasked vst).
    lane = min(1024, _round_up(batch, 128))
    rows = max(1, -(-batch // lane))              # rows of `lane` batch elems
    # Rows per grid step: multiple of 8 (full sublanes), aim for >=4 grid steps
    # on large batches, cap at 256 (256*1024 elems ~= 3 MiB in+out per step,
    # ~6 MiB double-buffered -> under default scoped VMEM on v5e/v6e/v7x).
    row_tile = min(256, max(8, _round_up(max(rows // 4, 1), 8)))
    rows_padded = _round_up(rows, row_tile)
    return lane, row_tile, rows_padded


def xornet_kernel(w1_ref, b1_ref, w2_ref, b2_ref, x_ref, o_ref):
    # x_ref: (2, Rt, C) VMEM tile; batch spread densely over sublanes x lanes.
    # Parameters are scalars in SMEM.
    x0 = x_ref[0]                                  # (Rt, C) dense slab
    x1 = x_ref[1]                                  # (Rt, C)

    # fc1 + ReLU + fc2, fully unrolled VPU broadcast mul-adds.
    # fc2 bias folded into the first term (no zeros materialize + add).
    h = jnp.maximum(w1_ref[0, 0] * x0 + w1_ref[1, 0] * x1 + b1_ref[0], 0.0)
    acc = w2_ref[0] * h + b2_ref[0]
    for j in range(1, 4):
        h = jnp.maximum(w1_ref[0, j] * x0 + w1_ref[1, j] * x1 + b1_ref[j], 0.0)
        acc = acc + w2_ref[j] * h

    # sigmoid(z) = 1 / (1 + exp(-z)); exp + approx reciprocal both run on the EUP.
    o_ref[...] = pl.reciprocal(1.0 + jnp.exp(-acc), approx=True)


@jax.jit
def xornet_forward(x, w1, b1, w2, b2):
    """x: (B, 2) float32 (PyTorch layout). w1: (2,4), b1: (4,), w2: (4,), b2: (1,).

    Returns (B, 1) float32 == sigmoid(relu(x @ W1 + b1) @ w2 + b2)."""
    batch = x.shape[0]
    lane, row_tile, rows_padded = _choose_tiling(batch)
    padded = rows_padded * lane

    # SoA layout: batch on the (sublane, lane) axes -> dense (2, Rp, C) slab.
    # TODO(synk): accept a pre-transposed/padded (2, B) input upstream (or
    # de-interleave in-kernel) to avoid this extra host-side transpose+pad pass.
    xt = x.astype(jnp.float32).T                          # (2, B)
    xt = jnp.pad(xt, ((0, 0), (0, padded - batch)))       # (2, Bp)
    xt = xt.reshape(2, rows_padded, lane)                 # (2, Rp, C)

    smem = pl.BlockSpec(memory_space=pltpu.MemorySpace.SMEM)
    out = pl.pallas_call(
        xornet_kernel,
        out_shape=jax.ShapeDtypeStruct((rows_padded, lane), jnp.float32),
        grid=(rows_padded // row_tile,),
        in_specs=[
            smem,                                                   # w1 (2, 4)
            smem,                                                   # b1 (4,)
            smem,                                                   # w2 (4,)
            smem,                                                   # b2 (1,)
            pl.BlockSpec((2, row_tile, lane), lambda i: (0, i, 0)),  # x tile
        ],
        out_specs=pl.BlockSpec((row_tile, lane), lambda i: (i, 0)),
        compiler_params=pltpu.CompilerParams(
            dimension_semantics=("parallel",),
            vmem_limit_bytes=32 * 1024 * 1024,
        ),
    )(w1, b1, w2, b2, xt)

    # Padded tail elements hold harmless garbage (sigmoid of bias terms); slice off.
    return out.reshape(padded)[:batch].reshape(batch, 1)


def init_params(key):
    """Deterministic init mimicking nn.Linear's U(-1/sqrt(fan_in), 1/sqrt(fan_in)).

    Weights stored already transposed to (in, out) for the kernel/reference."""
    k1, k2, k3, k4 = jax.random.split(key, 4)
    bound1 = 1.0 / jnp.sqrt(2.0)  # fc1: fan_in = 2
    bound2 = 1.0 / jnp.sqrt(4.0)  # fc2: fan_in = 4
    w1 = jax.random.uniform(k1, (2, 4), jnp.float32, -bound1, bound1)
    b1 = jax.random.uniform(k2, (4,), jnp.float32, -bound1, bound1)
    w2 = jax.random.uniform(k3, (4,), jnp.float32, -bound2, bound2)
    b2 = jax.random.uniform(k4, (1,), jnp.float32, -bound2, bound2)
    return w1, b1, w2, b2


def reference_forward(x, w1, b1, w2, b2):
    h = jnp.maximum(x @ w1 + b1, 0.0)
    return jax.nn.sigmoid(h @ w2[:, None] + b2)


if __name__ == "__main__":
    key = jax.random.PRNGKey(0)
    w1, b1, w2, b2 = init_params(key)

    # Canonical XOR truth table, tiled to batch=512.
    x4 = jnp.array([[0.0, 0.0],
                    [0.0, 1.0],
                    [1.0, 0.0],
                    [1.0, 1.0]], dtype=jnp.float32)
    x = jnp.tile(x4, (128, 1))  # (512, 2)

    out = jax.block_until_ready(xornet_forward(x, w1, b1, w2, b2))
    ref = reference_forward(x, w1, b1, w2, b2)
    assert out.shape == (512, 1), out.shape
    # approx reciprocal on the EUP has ~2^-12 relative error; output is in (0, 1).
    assert jnp.allclose(out, ref, atol=2e-3, rtol=2e-3), (out[:4], ref[:4])

    # Also exercise the small-batch padding path with the raw 4-row XOR input.
    out4 = jax.block_until_ready(xornet_forward(x4, w1, b1, w2, b2))
    ref4 = reference_forward(x4, w1, b1, w2, b2)
    assert out4.shape == (4, 1), out4.shape
    assert jnp.allclose(out4, ref4, atol=2e-3, rtol=2e-3), (out4, ref4)

    print("KERNEL_OK")
</pallas_src>

<mosaic_0001>
module attributes {stable_mosaic.version = 11 : i64} {
  func.func @xornet_kernel(%arg0: i32, %arg1: memref<2x4xf32, #tpu.memory_space<smem>>, %arg2: memref<4xf32, #tpu.memory_space<smem>>, %arg3: memref<4xf32, #tpu.memory_space<smem>>, %arg4: memref<1xf32, #tpu.memory_space<smem>>, %arg5: memref<2x8x512xf32, #tpu.memory_space<vmem>>, %arg6: memref<8x512xf32, #tpu.memory_space<vmem>>) attributes {dimension_semantics = [#tpu.dimension_semantics<parallel>], iteration_bounds = array<i64: 1>, scalar_prefetch = 0 : i64, scratch_operands = 0 : i64, tpu.core_type = #tpu.core_type<tc>, window_params = [{transform_indices = @transform_0, window_bounds = array<i64: 2, 4>}, {transform_indices = @transform_1, window_bounds = array<i64: 4>}, {transform_indices = @transform_2, window_bounds = array<i64: 4>}, {transform_indices = @transform_3, window_bounds = array<i64: 1>}, {transform_indices = @transform_4, window_bounds = array<i64: 2, 8, 512>}, {transform_indices = @transform_5, window_bounds = array<i64: 8, 512>}]} {
    %c0 = arith.constant 0 : index
    %c0_0 = arith.constant 0 : index
    %c0_1 = arith.constant 0 : index
    %0 = vector.load %arg5[%c0, %c0_0, %c0_1] : memref<2x8x512xf32, #tpu.memory_space<vmem>>, vector<1x8x512xf32>
    %1 = vector.shape_cast %0 : vector<1x8x512xf32> to vector<8x512xf32>
    %c1 = arith.constant 1 : index
    %c0_2 = arith.constant 0 : index
    %c0_3 = arith.constant 0 : index
    %2 = vector.load %arg5[%c1, %c0_2, %c0_3] : memref<2x8x512xf32, #tpu.memory_space<vmem>>, vector<1x8x512xf32>
    %3 = vector.shape_cast %2 : vector<1x8x512xf32> to vector<8x512xf32>
    %c0_4 = arith.constant 0 : index
    %c0_5 = arith.constant 0 : index
    %4 = memref.load %arg1[%c0_4, %c0_5] : memref<2x4xf32, #tpu.memory_space<smem>>
    %5 = vector.broadcast %4 : f32 to vector<8x512xf32>
    %6 = arith.mulf %5, %1 : vector<8x512xf32>
    %c1_6 = arith.constant 1 : index
    %c0_7 = arith.constant 0 : index
    %7 = memref.load %arg1[%c1_6, %c0_7] : memref<2x4xf32, #tpu.memory_space<smem>>
    %8 = vector.broadcast %7 : f32 to vector<8x512xf32>
    %9 = arith.mulf %8, %3 : vector<8x512xf32>
    %10 = arith.addf %6, %9 : vector<8x512xf32>
    %c0_8 = arith.constant 0 : index
    %11 = memref.load %arg2[%c0_8] : memref<4xf32, #tpu.memory_space<smem>>
    %12 = vector.broadcast %11 : f32 to vector<8x512xf32>
    %13 = arith.addf %10, %12 : vector<8x512xf32>
    %cst = arith.constant 0.000000e+00 : f32
    %14 = vector.broadcast %cst : f32 to vector<8x512xf32>
    %15 = arith.maximumf %13, %14 : vector<8x512xf32>
    %c0_9 = arith.constant 0 : index
    %16 = memref.load %arg3[%c0_9] : memref<4xf32, #tpu.memory_space<smem>>
    %17 = vector.broadcast %16 : f32 to vector<8x512xf32>
    %18 = arith.mulf %17, %15 : vector<8x512xf32>
    %c0_10 = arith.constant 0 : index
    %19 = memref.load %arg4[%c0_10] : memref<1xf32, #tpu.memory_space<smem>>
    %20 = vector.broadcast %19 : f32 to vector<8x512xf32>
    %21 = arith.addf %18, %20 : vector<8x512xf32>
    %c0_11 = arith.constant 0 : index
    %c1_12 = arith.constant 1 : index
    %22 = memref.load %arg1[%c0_11, %c1_12] : memref<2x4xf32, #tpu.memory_space<smem>>
    %23 = vector.broadcast %22 : f32 to vector<8x512xf32>
    %24 = arith.mulf %23, %1 : vector<8x512xf32>
    %c1_13 = arith.constant 1 : index
    %c1_14 = arith.constant 1 : index
    %25 = memref.load %arg1[%c1_13, %c1_14] : memref<2x4xf32, #tpu.memory_space<smem>>
    %26 = vector.broadcast %25 : f32 to vector<8x512xf32>
    %27 = arith.mulf %26, %3 : vector<8x512xf32>
    %28 = arith.addf %24, %27 : vector<8x512xf32>
    %c1_15 = arith.constant 1 : index
    %29 = memref.load %arg2[%c1_15] : memref<4xf32, #tpu.memory_space<smem>>
    %30 = vector.broadcast %29 : f32 to vector<8x512xf32>
    %31 = arith.addf %28, %30 : vector<8x512xf32>
    %cst_16 = arith.constant 0.000000e+00 : f32
    %32 = vector.broadcast %cst_16 : f32 to vector<8x512xf32>
    %33 = arith.maximumf %31, %32 : vector<8x512xf32>
    %c1_17 = arith.constant 1 : index
    %34 = memref.load %arg3[%c1_17] : memref<4xf32, #tpu.memory_space<smem>>
    %35 = vector.broadcast %34 : f32 to vector<8x512xf32>
    %36 = arith.mulf %35, %33 : vector<8x512xf32>
    %37 = arith.addf %21, %36 : vector<8x512xf32>
    %c0_18 = arith.constant 0 : index
    %c2 = arith.constant 2 : index
    %38 = memref.load %arg1[%c0_18, %c2] : memref<2x4xf32, #tpu.memory_space<smem>>
    %39 = vector.broadcast %38 : f32 to vector<8x512xf32>
    %40 = arith.mulf %39, %1 : vector<8x512xf32>
    %c1_19 = arith.constant 1 : index
    %c2_20 = arith.constant 2 : index
    %41 = memref.load %arg1[%c1_19, %c2_20] : memref<2x4xf32, #tpu.memory_space<smem>>
    %42 = vector.broadcast %41 : f32 to vector<8x512xf32>
    %43 = arith.mulf %42, %3 : vector<8x512xf32>
    %44 = arith.addf %40, %43 : vector<8x512xf32>
    %c2_21 = arith.constant 2 : index
    %45 = memref.load %arg2[%c2_21] : memref<4xf32, #tpu.memory_space<smem>>
    %46 = vector.broadcast %45 : f32 to vector<8x512xf32>
    %47 = arith.addf %44, %46 : vector<8x512xf32>
    %cst_22 = arith.constant 0.000000e+00 : f32
    %48 = vector.broadcast %cst_22 : f32 to vector<8x512xf32>
    %49 = arith.maximumf %47, %48 : vector<8x512xf32>
    %c2_23 = arith.constant 2 : index
    %50 = memref.load %arg3[%c2_23] : memref<4xf32, #tpu.memory_space<smem>>
    %51 = vector.broadcast %50 : f32 to vector<8x512xf32>
    %52 = arith.mulf %51, %49 : vector<8x512xf32>
    %53 = arith.addf %37, %52 : vector<8x512xf32>
    %c0_24 = arith.constant 0 : index
    %c3 = arith.constant 3 : index
    %54 = memref.load %arg1[%c0_24, %c3] : memref<2x4xf32, #tpu.memory_space<smem>>
    %55 = vector.broadcast %54 : f32 to vector<8x512xf32>
    %56 = arith.mulf %55, %1 : vector<8x512xf32>
    %c1_25 = arith.constant 1 : index
    %c3_26 = arith.constant 3 : index
    %57 = memref.load %arg1[%c1_25, %c3_26] : memref<2x4xf32, #tpu.memory_space<smem>>
    %58 = vector.broadcast %57 : f32 to vector<8x512xf32>
    %59 = arith.mulf %58, %3 : vector<8x512xf32>
    %60 = arith.addf %56, %59 : vector<8x512xf32>
    %c3_27 = arith.constant 3 : index
    %61 = memref.load %arg2[%c3_27] : memref<4xf32, #tpu.memory_space<smem>>
    %62 = vector.broadcast %61 : f32 to vector<8x512xf32>
    %63 = arith.addf %60, %62 : vector<8x512xf32>
    %cst_28 = arith.constant 0.000000e+00 : f32
    %64 = vector.broadcast %cst_28 : f32 to vector<8x512xf32>
    %65 = arith.maximumf %63, %64 : vector<8x512xf32>
    %c3_29 = arith.constant 3 : index
    %66 = memref.load %arg3[%c3_29] : memref<4xf32, #tpu.memory_space<smem>>
    %67 = vector.broadcast %66 : f32 to vector<8x512xf32>
    %68 = arith.mulf %67, %65 : vector<8x512xf32>
    %69 = arith.addf %53, %68 : vector<8x512xf32>
    %cst_30 = arith.constant 0.000000e+00 : f32
    %70 = vector.broadcast %cst_30 : f32 to vector<8x512xf32>
    %71 = arith.subf %70, %69 : vector<8x512xf32>
    %72 = math.exp %71 : vector<8x512xf32>
    %cst_31 = arith.constant 1.000000e+00 : f32
    %73 = vector.broadcast %cst_31 : f32 to vector<8x512xf32>
    %74 = arith.addf %73, %72 : vector<8x512xf32>
    %75 = tpu.reciprocal %74 {approx = true} : vector<8x512xf32> -> vector<8x512xf32>
    %c0_32 = arith.constant 0 : index
    %c0_33 = arith.constant 0 : index
    %76 = vector.load %arg6[%c0_32, %c0_33] : memref<8x512xf32, #tpu.memory_space<vmem>>, vector<8x512xf32>
    tpu.vector_store %arg6[%c0_32, %c0_33], %75 {strides = array<i32>} : memref<8x512xf32, #tpu.memory_space<vmem>>, vector<8x512xf32>,
    return
  }
  func.func @transform_0(%arg0: i32) -> (i32, i32) {
    %c0_i32 = arith.constant 0 : i32
    %c0_i32_0 = arith.constant 0 : i32
    %c0_i32_1 = arith.constant 0 : i32
    return %c0_i32, %c0_i32_0 : i32, i32
  }
  func.func @transform_1(%arg0: i32) -> i32 {
    %c0_i32 = arith.constant 0 : i32
    %c0_i32_0 = arith.constant 0 : i32
    return %c0_i32 : i32
  }
  func.func @transform_2(%arg0: i32) -> i32 {
    %c0_i32 = arith.constant 0 : i32
    %c0_i32_0 = arith.constant 0 : i32
    return %c0_i32 : i32
  }
  func.func @transform_3(%arg0: i32) -> i32 {
    %c0_i32 = arith.constant 0 : i32
    %c0_i32_0 = arith.constant 0 : i32
    return %c0_i32 : i32
  }
  func.func @transform_4(%arg0: i32) -> (i32, i32, i32) {
    %c0_i32 = arith.constant 0 : i32
    %c0_i32_0 = arith.constant 0 : i32
    %c0_i32_1 = arith.constant 0 : i32
    return %c0_i32, %arg0, %c0_i32_0 : i32, i32, i32
  }
  func.func @transform_5(%arg0: i32) -> (i32, i32) {
    %c0_i32 = arith.constant 0 : i32
    %c0_i32_0 = arith.constant 0 : i32
    return %arg0, %c0_i32 : i32, i32
  }
}

</mosaic_0001>

<llo_original>
// kernel: xornet_forward.1
$region0: #{xornet_forward.1}
  #allocation0 [shape = 'u32[]', space=smem, size = 0x4, offset = 0x4, fixed_abs, tag = 'smem constant byte address 0x4 - core index']
  #allocation1 [shape = 'u32[144,128]{1,0:T(1,128)}', space=vmem, size = 0x12000, scoped, tag = 'internal scratch']
  #allocation2 [shape = 'f32[1]{0:T(128)S(6)}', space=smem, size = 0x200, scoped, tag = 'scoped memory for xornet_forward.1']
  %s0 = inlined_call_operand.vmem [shape: f32[2,4], index: 0, kind: input, shape index: {}]
  %s1 = inlined_call_operand.vmem [shape: f32[4], index: 1, kind: input, shape index: {}]
  %s2 = inlined_call_operand.vmem [shape: f32[4], index: 2, kind: input, shape index: {}]
  %s3 = inlined_call_operand.<no memory space> [shape: f32[1], index: 3, kind: input, shape index: {}]
  %s4 = inlined_call_operand.vmem [shape: f32[2,8,512], index: 4, kind: input, shape index: {}]
  %s5 = inlined_call_operand.vmem [shape: f32[8,512], index: 5, kind: output, shape index: {}]
  %s6 = sld [smem:[#allocation0]]
  $region42: #{xornet_forward.1} parent=0
    _
  %s8 = ssub.s32 1, %s6
  %s9 = scalar_select 0, %s8, %s6
  %10 = sst [smem:[#allocation2]] %s3
  $region1: #{xornet_forward.1} parent=0
    #allocation3 [shape = 'u8[1024]{0}', space=smem, size = 0x400, scoped, tag = 'input window, operand 0, single buffered']
    #allocation4 [shape = 's32[1]{0}', space=sflag, size = 0x4, scoped, tag = 'scoped memory for xornet_forward.1']
    #allocation5 [shape = 'u8[512]{0}', space=smem, size = 0x200, scoped, tag = 'input window, operand 1, single buffered']
    #allocation6 [shape = 's32[1]{0}', space=sflag, size = 0x4, scoped, tag = 'scoped memory for xornet_forward.1']
    #allocation7 [shape = 'u8[512]{0}', space=smem, size = 0x200, scoped, tag = 'input window, operand 2, single buffered']
    %11 = vsyncpa [#allocation4], 0
    %12 = vsyncpa [#allocation6], 0
    // Predicated region
    $region2: #{xornet_forward.1} parent=1 // pred_check
      _
    $region3: #{xornet_forward.1} parent=1 // pred_check_branch
      %14 = sbr.rel (0) target = $region5
    $region4: #{xornet_forward.1} parent=1 // pred_region
      %s16 = ssub.s32 32, 32
      %17 = vsyncadd [#allocation4], %s16
      %s19 = sshll.u32 %s0, 4
      %s20 = int_to_ptr.vmem [resolvable:$true] %s19
      %22 = dma.vmem_to_smem %s20, 32, [#allocation3], [#allocation4]
    $region5: #{xornet_forward.1} parent=1 // pred_fallthru
      _
    // Predicated region
    $region6: #{xornet_forward.1} parent=1 // pred_check
      _
    $region7: #{xornet_forward.1} parent=1 // pred_check_branch
      %24 = sbr.rel (0) target = $region9
    $region8: #{xornet_forward.1} parent=1 // pred_region
      %s26 = ssub.s32 16, 16
      %27 = vsyncadd [#allocation6], %s26
      %s29 = sshll.u32 %s1, 4
      %s30 = int_to_ptr.vmem [resolvable:$true] %s29
      %32 = dma.vmem_to_smem %s30, 16, [#allocation5], [#allocation6]
    $region9: #{xornet_forward.1} parent=1 // pred_fallthru
      _
    // Predicated region
    $region10: #{xornet_forward.1} parent=1 // pred_check
      _
    $region11: #{xornet_forward.1} parent=1 // pred_check_branch
      %34 = sbr.rel (0) target = $region13
    $region12: #{xornet_forward.1} parent=1 // pred_region
      %s36 = ssub.s32 16, 16
      %37 = vsyncadd [#allocation6], %s36
      %s39 = sshll.u32 %s2, 4
      %s40 = int_to_ptr.vmem [resolvable:$true] %s39
      %42 = dma.vmem_to_smem %s40, 16, [#allocation7], [#allocation6]
    $region13: #{xornet_forward.1} parent=1 // pred_fallthru
      _
    // Predicated region
    $region14: #{xornet_forward.1} parent=1 // pred_check
      _
    $region15: #{xornet_forward.1} parent=1 // pred_check_branch
      %44 = sbr.rel (0) target = $region17
    $region16: #{xornet_forward.1} parent=1 // pred_region
      _
    $region17: #{xornet_forward.1} parent=1 // pred_fallthru
      _
    // Predicated region
    $region18: #{xornet_forward.1} parent=1 // pred_check
      _
    $region19: #{xornet_forward.1} parent=1 // pred_check_branch
      %46 = sbr.rel (0) target = $region21
    $region20: #{xornet_forward.1} parent=1 // pred_region
      _
    $region21: #{xornet_forward.1} parent=1 // pred_fallthru
      _
    // Predicated region
    $region22: #{xornet_forward.1} parent=1 // pred_check
      _
    $region23: #{xornet_forward.1} parent=1 // pred_check_branch
      %48 = sbr.rel (0) target = $region25
    $region24: #{xornet_forward.1} parent=1 // pred_region
      %49 = dma.done [#allocation4], 32
    $region25: #{xornet_forward.1} parent=1 // pred_fallthru
      _
    // Predicated region
    $region26: #{xornet_forward.1} parent=1 // pred_check
      _
    $region27: #{xornet_forward.1} parent=1 // pred_check_branch
      %51 = sbr.rel (0) target = $region29
    $region28: #{xornet_forward.1} parent=1 // pred_region
      %52 = dma.done [#allocation6], 16
    $region29: #{xornet_forward.1} parent=1 // pred_fallthru
      _
    // Predicated region
    $region30: #{xornet_forward.1} parent=1 // pred_check
      _
    $region31: #{xornet_forward.1} parent=1 // pred_check_branch
      %54 = sbr.rel (0) target = $region33
    $region32: #{xornet_forward.1} parent=1 // pred_region
      %55 = dma.done [#allocation6], 16
    $region33: #{xornet_forward.1} parent=1 // pred_fallthru
      _
    %56 = sfence
    %v57 = vld [vmem:[%s4] sm:$0xff]
    %v58 = vld [vmem:[%s4 + $0x8] sm:$0xff]
    %v59 = vld [vmem:[%s4 + $0x10] sm:$0xff]
    %v60 = vld [vmem:[%s4 + $0x18] sm:$0xff]
    %s61 = scalar_lea.vmem %s4, 32
    %v62 = vld [vmem:[%s61] sm:$0xff]
    %v63 = vld [vmem:[%s61 + $0x8] sm:$0xff]
    %v64 = vld [vmem:[%s61 + $0x10] sm:$0xff]
    %v65 = vld [vmem:[%s61 + $0x18] sm:$0xff]
    %s66 = sld [smem:[#allocation3]]
    %v67 = vstv %s66
    %v68 = vmul.f32 %v67, %v57
    %v69 = vmul.f32 %v67, %v58
    %v70 = vmul.f32 %v67, %v59
    %v71 = vmul.f32 %v67, %v60
    %s72 = sld [smem:[#allocation3 + $0x80]]
    %v73 = vstv %s72
    %v74 = vmul.f32 %v73, %v62
    %v75 = vmul.f32 %v73, %v63
    %v76 = vmul.f32 %v73, %v64
    %v77 = vmul.f32 %v73, %v65
    %v78 = vadd.f32 %v68, %v74
    %v79 = vadd.f32 %v69, %v75
    %v80 = vadd.f32 %v70, %v76
    %v81 = vadd.f32 %v71, %v77
    %s82 = sld [smem:[#allocation5]]
    %v83 = vstv %s82
    %v84 = vadd.f32 %v78, %v83
    %v85 = vadd.f32 %v79, %v83
    %v86 = vadd.f32 %v80, %v83
    %v87 = vadd.f32 %v81, %v83
    %v88 = vmax.f32 %v84, 0.0
    %v89 = vmax.f32 %v85, 0.0
    %v90 = vmax.f32 %v86, 0.0
    %v91 = vmax.f32 %v87, 0.0
    %s92 = sld [smem:[#allocation7]]
    %v93 = vstv %s92
    %v94 = vmul.f32 %v93, %v88
    %v95 = vmul.f32 %v93, %v89
    %v96 = vmul.f32 %v93, %v90
    %v97 = vmul.f32 %v93, %v91
    %s98 = sld [smem:[#allocation2]]
    %v99 = vstv %s98
    %v100 = vadd.f32 %v94, %v99
    %v101 = vadd.f32 %v95, %v99
    %v102 = vadd.f32 %v96, %v99
    %v103 = vadd.f32 %v97, %v99
    %s104 = sld [smem:[#allocation3 + $0x1]]
    %v105 = vstv %s104
    %v106 = vmul.f32 %v105, %v57
    %v107 = vmul.f32 %v105, %v58
    %v108 = vmul.f32 %v105, %v59
    %v109 = vmul.f32 %v105, %v60
    %s110 = sld [smem:[#allocation3 + $0x81]]
    %v111 = vstv %s110
    %v112 = vmul.f32 %v111, %v62
    %v113 = vmul.f32 %v111, %v63
    %v114 = vmul.f32 %v111, %v64
    %v115 = vmul.f32 %v111, %v65
    %v116 = vadd.f32 %v106, %v112
    %v117 = vadd.f32 %v107, %v113
    %v118 = vadd.f32 %v108, %v114
    %v119 = vadd.f32 %v109, %v115
    %s120 = sld [smem:[#allocation5 + $0x1]]
    %v121 = vstv %s120
    %v122 = vadd.f32 %v116, %v121
    %v123 = vadd.f32 %v117, %v121
    %v124 = vadd.f32 %v118, %v121
    %v125 = vadd.f32 %v119, %v121
    %v126 = vmax.f32 %v122, 0.0
    %v127 = vmax.f32 %v123, 0.0
    %v128 = vmax.f32 %v124, 0.0
    %v129 = vmax.f32 %v125, 0.0
    %s130 = sld [smem:[#allocation7 + $0x1]]
    %v131 = vstv %s130
    %v132 = vmul.f32 %v131, %v126
    %v133 = vmul.f32 %v131, %v127
    %v134 = vmul.f32 %v131, %v128
    %v135 = vmul.f32 %v131, %v129
    %v136 = vadd.f32 %v100, %v132
    %v137 = vadd.f32 %v101, %v133
    %v138 = vadd.f32 %v102, %v134
    %v139 = vadd.f32 %v103, %v135
    %s140 = sld [smem:[#allocation3 + $0x2]]
    %v141 = vstv %s140
    %v142 = vmul.f32 %v141, %v57
    %v143 = vmul.f32 %v141, %v58
    %v144 = vmul.f32 %v141, %v59
    %v145 = vmul.f32 %v141, %v60
    %s146 = sld [smem:[#allocation3 + $0x82]]
    %v147 = vstv %s146
    %v148 = vmul.f32 %v147, %v62
    %v149 = vmul.f32 %v147, %v63
    %v150 = vmul.f32 %v147, %v64
    %v151 = vmul.f32 %v147, %v65
    %v152 = vadd.f32 %v142, %v148
    %v153 = vadd.f32 %v143, %v149
    %v154 = vadd.f32 %v144, %v150
    %v155 = vadd.f32 %v145, %v151
    %s156 = sld [smem:[#allocation5 + $0x2]]
    %v157 = vstv %s156
    %v158 = vadd.f32 %v152, %v157
    %v159 = vadd.f32 %v153, %v157
    %v160 = vadd.f32 %v154, %v157
    %v161 = vadd.f32 %v155, %v157
    %v162 = vmax.f32 %v158, 0.0
    %v163 = vmax.f32 %v159, 0.0
    %v164 = vmax.f32 %v160, 0.0
    %v165 = vmax.f32 %v161, 0.0
    %s166 = sld [smem:[#allocation7 + $0x2]]
    %v167 = vstv %s166
    %v168 = vmul.f32 %v167, %v162
    %v169 = vmul.f32 %v167, %v163
    %v170 = vmul.f32 %v167, %v164
    %v171 = vmul.f32 %v167, %v165
    %v172 = vadd.f32 %v136, %v168
    %v173 = vadd.f32 %v137, %v169
    %v174 = vadd.f32 %v138, %v170
    %v175 = vadd.f32 %v139, %v171
    %s176 = sld [smem:[#allocation3 + $0x3]]
    %v177 = vstv %s176
    %v178 = vmul.f32 %v177, %v57
    %v179 = vmul.f32 %v177, %v58
    %v180 = vmul.f32 %v177, %v59
    %v181 = vmul.f32 %v177, %v60
    %s182 = sld [smem:[#allocation3 + $0x83]]
    %v183 = vstv %s182
    %v184 = vmul.f32 %v183, %v62
    %v185 = vmul.f32 %v183, %v63
    %v186 = vmul.f32 %v183, %v64
    %v187 = vmul.f32 %v183, %v65
    %v188 = vadd.f32 %v178, %v184
    %v189 = vadd.f32 %v179, %v185
    %v190 = vadd.f32 %v180, %v186
    %v191 = vadd.f32 %v181, %v187
    %s192 = sld [smem:[#allocation5 + $0x3]]
    %v193 = vstv %s192
    %v194 = vadd.f32 %v188, %v193
    %v195 = vadd.f32 %v189, %v193
    %v196 = vadd.f32 %v190, %v193
    %v197 = vadd.f32 %v191, %v193
    %v198 = vmax.f32 %v194, 0.0
    %v199 = vmax.f32 %v195, 0.0
    %v200 = vmax.f32 %v196, 0.0
    %v201 = vmax.f32 %v197, 0.0
    %s202 = sld [smem:[#allocation7 + $0x3]]
    %v203 = vstv %s202
    %v204 = vmul.f32 %v203, %v198
    %v205 = vmul.f32 %v203, %v199
    %v206 = vmul.f32 %v203, %v200
    %v207 = vmul.f32 %v203, %v201
    %v208 = vadd.f32 %v172, %v204
    %v209 = vadd.f32 %v173, %v205
    %v210 = vadd.f32 %v174, %v206
    %v211 = vadd.f32 %v175, %v207
    %v212 = vsub.f32 0.0, %v208
    %v213 = vsub.f32 0.0, %v209
    %v214 = vsub.f32 0.0, %v210
    %v215 = vsub.f32 0.0, %v211
    %v216 = vmul.f32 %v212, 1.442695
    %v217 = vpow.pop %v216
    %v218 = vmul.f32 %v213, 1.442695
    %v219 = vpow.pop %v218
    %v220 = vmul.f32 %v214, 1.442695
    %v221 = vpow.pop %v220
    %v222 = vmul.f32 %v215, 1.442695
    %v223 = vpow.pop %v222
    %v224 = vadd.f32 %v217, 1.0
    %v225 = vadd.f32 %v219, 1.0
    %v226 = vadd.f32 %v221, 1.0
    %v227 = vadd.f32 %v223, 1.0
    %v228 = vrcp.pop %v224
    %v229 = vrcp.pop %v225
    %v230 = vrcp.pop %v226
    %v231 = vrcp.pop %v227
    %232 = vst [vmem:[%s5] sm:$0xff] %v228
    %233 = vst [vmem:[%s5 + $0x8] sm:$0xff] %v229
    %234 = vst [vmem:[%s5 + $0x10] sm:$0xff] %v230
    %235 = vst [vmem:[%s5 + $0x18] sm:$0xff] %v231
    // Predicated region
    $region34: #{xornet_forward.1} parent=1 // pred_check
      _
    $region35: #{xornet_forward.1} parent=1 // pred_check_branch
      %237 = sbr.rel (0) target = $region37
    $region36: #{xornet_forward.1} parent=1 // pred_region
      _
    $region37: #{xornet_forward.1} parent=1 // pred_fallthru
      _
    // Predicated region
    $region38: #{xornet_forward.1} parent=1 // pred_check
      _
    $region39: #{xornet_forward.1} parent=1 // pred_check_branch
      %239 = sbr.rel (0) target = $region41
    $region40: #{xornet_forward.1} parent=1 // pred_region
      _
    $region41: #{xornet_forward.1} parent=1 // pred_fallthru
      _
    %240 = vsyncpa [#allocation4], 1
    %241 = vsyncpa [#allocation6], 1

</llo_original>
